<compile_context>
chip_gen: v7x
topology: tpu7x:2x2x1
jax: 0.10.0
libtpu: 0.0.40
codegen_flags: <defaults>
</compile_context>

<pallas_src>
import jax
import jax.numpy as jnp
from jax.experimental import pallas as pl
from jax.experimental.pallas import tpu as pltpu


def _round_up(v, m):
    return ((v + m - 1) // m) * m


def _antecedent_kernel(a_ref, b_ref, o_ref):
    # a_ref: [TN, Kp]  augmented samples [x*x, x, 1] (zero-padded)
    # b_ref: [Kp, TR]  fused rule constants [[-w.T], [2*(w*c).T], [-k]]
    # o_ref: [TN, TR]  firing strengths for this (N, R) tile
    # Single fused MXU matmul gives -z directly; exp goes to the EUP slot.
    neg_z = jnp.dot(a_ref[...], b_ref[...], preferred_element_type=jnp.float32)
    o_ref[...] = jnp.exp(neg_z).astype(o_ref.dtype)


def antecedent_forward(x, center, spread, frb, out_dtype=jnp.float32):
    """
    x:      [N, D]   input samples
    center: [S, D]   Gaussian centers (S = num_fuzzy_set)
    spread: [S, D]   Gaussian spreads
    frb:    [R, D]   int32 fuzzy-rule-base index (CoCo-FRB: frb[r,d] = r, R = S)
    out_dtype: jnp.float32 (default, matches reference) or jnp.bfloat16 to halve
               HBM writeback on write-bound v5e/v6e (exp is still computed in f32).
    returns firing strengths [N, R] (unnormalized)
    """
    x = x.astype(jnp.float32)
    center = center.astype(jnp.float32)
    spread = spread.astype(jnp.float32)

    N, D = x.shape
    R = frb.shape[0]

    # --- Glue (plain JAX): gather rule-wise centers / spreads via the FRB index ---
    d_idx = jnp.arange(D)
    c_rule = center[frb, d_idx[None, :]]                   # [R, D]
    s_rule = spread[frb, d_idx[None, :]]                   # [R, D]
    # NOTE: spread == 0 gives inf/NaN (same hazard as the PyTorch original).
    w_rule = 1.0 / (2.0 * s_rule * s_rule)                 # [R, D]
    wc_rule = w_rule * c_rule                              # [R, D]
    k_rule = jnp.sum(wc_rule * c_rule, axis=-1)            # [R]

    # --- Padding / tiling for TPU layout ---
    K = 2 * D + 1                                          # augmented contraction dim
    K_pad = _round_up(K, 8)
    R_pad = _round_up(max(R, 1), 128)

    # R tiling: block of up to 2048 lanes (lane-dense, multiple of 128).
    TR = min(2048, R_pad)
    R_pad = _round_up(R_pad, TR)

    # N tiling: as large as the VMEM budget allows (writeback-bound kernel).
    TN = min(1024, _round_up(max(N, 1), 8))

    def _vmem_need(tn):
        # double-buffered output + double-buffered A tile + double-buffered B tile
        return 4 * (2 * tn * TR + 2 * tn * K_pad + 2 * K_pad * TR)

    budget = 48 << 20  # conservative cap: well inside v7x's 64 MiB physical VMEM
    while TN > 8 and int(1.2 * _vmem_need(TN)) > budget:
        TN = max(8, TN // 2)
    N_pad = _round_up(max(N, 1), TN)

    # --- Augmented LHS A = [x*x, x, 1] (hoisted out of the kernel) ---
    a = jnp.zeros((N_pad, K_pad), jnp.float32)
    a = a.at[:N, :D].set(x * x)
    a = a.at[:N, D:2 * D].set(x)
    a = a.at[:N, 2 * D].set(1.0)

    # --- Fused RHS B = [[-w.T], [2*(w*c).T], [-k]]; padded rules -> zero columns ---
    b = jnp.zeros((K_pad, R_pad), jnp.float32)
    b = b.at[:D, :R].set(-w_rule.T)
    b = b.at[D:2 * D, :R].set(2.0 * wc_rule.T)
    b = b.at[2 * D, :R].set(-k_rule)

    grid = (N_pad // TN, R_pad // TR)
    vmem_limit = min(budget, max(32 << 20, int(1.2 * _vmem_need(TN))))

    out = pl.pallas_call(
        _antecedent_kernel,
        out_shape=jax.ShapeDtypeStruct((N_pad, R_pad), out_dtype),
        grid_spec=pltpu.PrefetchScalarGridSpec(
            num_scalar_prefetch=0,
            grid=grid,
            in_specs=[
                pl.BlockSpec((TN, K_pad), lambda i, j: (i, 0)),   # A tile (pipelined over N)
                pl.BlockSpec((K_pad, TR), lambda i, j: (0, j)),   # fused rule constants
            ],
            out_specs=pl.BlockSpec((TN, TR), lambda i, j: (i, j)),
        ),
        compiler_params=pltpu.CompilerParams(
            dimension_semantics=("parallel", "parallel"),
            vmem_limit_bytes=vmem_limit,
        ),
    )(a, b)

    return out[:N, :R]


def make_antecedent_params(in_dim, num_fuzzy_set):
    # Deterministic init matching Antecedent.__init__ (mf='Gaussian', frb='CoCo-FRB').
    denom = max(num_fuzzy_set - 1, 1)
    partition = jnp.arange(num_fuzzy_set, dtype=jnp.float32) / denom
    center = jnp.tile(partition[:, None], (1, in_dim))               # [S, D]
    spread = jnp.ones((num_fuzzy_set, in_dim), dtype=jnp.float32)    # [S, D]
    # CoCo-FRB: row r is [r]*in_dim
    frb = jnp.tile(jnp.arange(num_fuzzy_set, dtype=jnp.int32)[:, None], (1, in_dim))
    return center, spread, frb


if __name__ == "__main__":
    in_dim = 4
    num_fuzzy_set = 5
    num_sam = 8

    key = jax.random.PRNGKey(0)
    x = jax.random.uniform(key, (num_sam, in_dim), dtype=jnp.float32)

    center, spread, frb = make_antecedent_params(in_dim, num_fuzzy_set)

    fir_str = antecedent_forward(x, center, spread, frb)
    fir_str = jax.block_until_ready(fir_str)

    # Reference (plain JAX) sanity check of the same semantics (direct (x-c)^2 form).
    mv = jnp.exp(-((x[:, None, :] - center[None, :, :]) ** 2) / (2.0 * spread[None, :, :] ** 2))
    ref = jnp.prod(mv[:, frb, jnp.arange(in_dim)], axis=2)

    assert fir_str.shape == (num_sam, num_fuzzy_set)
    # Expanded-quadratic form has mild f32 cancellation when x ~ c; tolerance reflects that.
    assert jnp.allclose(fir_str, ref, rtol=2e-5, atol=1e-5)

    print("KERNEL_OK")
</pallas_src>

<mosaic_0001>
module attributes {stable_mosaic.version = 11 : i64} {
  func.func @_antecedent_kernel(%arg0: i32, %arg1: i32, %arg2: memref<8x16xf32, #tpu.memory_space<vmem>>, %arg3: memref<16x128xf32, #tpu.memory_space<vmem>>, %arg4: memref<8x128xf32, #tpu.memory_space<vmem>>) attributes {dimension_semantics = [#tpu.dimension_semantics<parallel>, #tpu.dimension_semantics<parallel>], iteration_bounds = array<i64: 1, 1>, scalar_prefetch = 0 : i64, scratch_operands = 0 : i64, tpu.core_type = #tpu.core_type<tc>, window_params = [{transform_indices = @transform_0, window_bounds = array<i64: 8, 16>}, {transform_indices = @transform_1, window_bounds = array<i64: 16, 128>}, {transform_indices = @transform_2, window_bounds = array<i64: 8, 128>}]} {
    %c0 = arith.constant 0 : index
    %c0_0 = arith.constant 0 : index
    %0 = vector.load %arg2[%c0, %c0_0] : memref<8x16xf32, #tpu.memory_space<vmem>>, vector<8x16xf32>
    %c0_1 = arith.constant 0 : index
    %c0_2 = arith.constant 0 : index
    %1 = vector.load %arg3[%c0_1, %c0_2] : memref<16x128xf32, #tpu.memory_space<vmem>>, vector<16x128xf32>
    %cst = arith.constant dense<0.000000e+00> : vector<8x128xf32>
    %2 = tpu.matmul %0, %1, %cst {dimension_numbers = #tpu.dot_dimension_numbers<[1], [0], [0], [1], [0, 0, 1, 1], [], []>} : vector<8x16xf32>, vector<16x128xf32>, vector<8x128xf32> -> vector<8x128xf32>
    %3 = math.exp %2 : vector<8x128xf32>
    %c0_3 = arith.constant 0 : index
    %c0_4 = arith.constant 0 : index
    %4 = vector.load %arg4[%c0_3, %c0_4] : memref<8x128xf32, #tpu.memory_space<vmem>>, vector<8x128xf32>
    tpu.vector_store %arg4[%c0_3, %c0_4], %3 {strides = array<i32>} : memref<8x128xf32, #tpu.memory_space<vmem>>, vector<8x128xf32>,
    return
  }
  func.func @transform_0(%arg0: i32, %arg1: i32) -> (i32, i32) {
    %c0_i32 = arith.constant 0 : i32
    %c0_i32_0 = arith.constant 0 : i32
    return %arg0, %c0_i32 : i32, i32
  }
  func.func @transform_1(%arg0: i32, %arg1: i32) -> (i32, i32) {
    %c0_i32 = arith.constant 0 : i32
    %c0_i32_0 = arith.constant 0 : i32
    return %c0_i32, %arg1 : i32, i32
  }
  func.func @transform_2(%arg0: i32, %arg1: i32) -> (i32, i32) {
    %c0_i32 = arith.constant 0 : i32
    return %arg0, %arg1 : i32, i32
  }
}

</mosaic_0001>

<llo_original>
// kernel: tpu_custom_call.1
$region0: #{tpu_custom_call.1}
  #allocation0 [shape = 'u32[]', space=smem, size = 0x4, offset = 0x4, fixed_abs, tag = 'smem constant byte address 0x4 - core index']
  #allocation1 [shape = 'u32[144,128]{1,0:T(1,128)}', space=vmem, size = 0x12000, scoped, tag = 'internal scratch']
  %s0 = inlined_call_operand.hbm [shape: f32[8,16], index: 0, kind: input, shape index: {}]
  %s1 = inlined_call_operand.hbm [shape: f32[16,128], index: 1, kind: input, shape index: {}]
  %s2 = inlined_call_operand.hbm [shape: f32[8,128], index: 2, kind: output, shape index: {}]
  %s3 = sld [smem:[#allocation0]]
  $region26: #{tpu_custom_call.1} parent=0
    _
  %s5 = ssub.s32 1, %s3
  %s6 = scalar_select 0, %s5, %s3
  $region1: #{tpu_custom_call.1} parent=0
    #allocation2 [shape = 'u8[4096]{0}', space=vmem, size = 0x1000, scoped, tag = 'input window, operand 0, single buffered']
    #allocation3 [shape = 's32[1]{0}', space=sflag, size = 0x4, scoped, tag = 'scoped memory for tpu_custom_call.1']
    #allocation4 [shape = 's32[1]{0}', space=sflag, size = 0x4, scoped, tag = 'scoped memory for tpu_custom_call.1']
    #allocation5 [shape = 'u8[8192]{0}', space=vmem, size = 0x2000, scoped, tag = 'input window, operand 1, single buffered']
    #allocation6 [shape = 's32[1]{0}', space=sflag, size = 0x4, scoped, tag = 'scoped memory for tpu_custom_call.1']
    #allocation7 [shape = 'u8[4096]{0}', space=vmem, size = 0x1000, scoped, tag = 'output window, operand 0, single buffered']
    %7 = vsyncpa [#allocation3], 0
    %8 = vsyncpa [#allocation6], 0
    %9 = vsyncpa [#allocation4], 0
    // Predicated region
    $region2: #{tpu_custom_call.1} parent=1 // pred_check
      _
    $region3: #{tpu_custom_call.1} parent=1 // pred_check_branch
      %11 = sbr.rel (0) target = $region5
    $region4: #{tpu_custom_call.1} parent=1 // pred_region
      %s13 = ssub.s32 128, 128
      %14 = vsyncadd [#allocation3], %s13
      %s16 = sshll.u32 [#allocation2], 4
      %s17 = int_to_ptr.vmem [resolvable:$true] %s16
      %19 = dma.hbm_to_vmem [thread:$0]  %s0, 128, %s17, [#allocation3]
    $region5: #{tpu_custom_call.1} parent=1 // pred_fallthru
      _
    // Predicated region
    $region6: #{tpu_custom_call.1} parent=1 // pred_check
      _
    $region7: #{tpu_custom_call.1} parent=1 // pred_check_branch
      %21 = sbr.rel (0) target = $region9
    $region8: #{tpu_custom_call.1} parent=1 // pred_region
      %s23 = ssub.s32 256, 256
      %24 = vsyncadd [#allocation6], %s23
      %s25 = sshll.u32 [#allocation5], 4
      %s26 = int_to_ptr.vmem [resolvable:$true] %s25
      %31 = dma.hbm_to_vmem [thread:$0]  %s1, 256, %s26, [#allocation6], 128, 128, 8
    $region9: #{tpu_custom_call.1} parent=1 // pred_fallthru
      _
    // Predicated region
    $region10: #{tpu_custom_call.1} parent=1 // pred_check
      _
    $region11: #{tpu_custom_call.1} parent=1 // pred_check_branch
      %33 = sbr.rel (0) target = $region13
    $region12: #{tpu_custom_call.1} parent=1 // pred_region
      %34 = dma.done [#allocation3], 128
    $region13: #{tpu_custom_call.1} parent=1 // pred_fallthru
      _
    // Predicated region
    $region14: #{tpu_custom_call.1} parent=1 // pred_check
      _
    $region15: #{tpu_custom_call.1} parent=1 // pred_check_branch
      %36 = sbr.rel (0) target = $region17
    $region16: #{tpu_custom_call.1} parent=1 // pred_region
      %37 = dma.done [#allocation6], 256
    $region17: #{tpu_custom_call.1} parent=1 // pred_fallthru
      _
    %v38 = vld [vmem:[#allocation2] sm:$0xff]
    %v39 = vld [vmem:[#allocation5] sm:$0xff]
    %v40 = vld [vmem:[#allocation5 + $0x8] sm:$0xff]
    %vm41 = vcmask 130048
    %v43 = vsel %vm41, %v38, 0
    %45 = vmatprep.subr.mxu0 0.0
    %46 = vmatpush1.msra.mxu0 %v39
    %47 = vmatprep.subr.mxu0 0.0
    %48 = vmatpush1.msra.mxu0 %v40
    %49 = vmatprep.subr.mxu0 0.0
    %50 = vmatpush1.msra.mxu0 0.0
    %51 = vmatprep.subr.mxu0 0.0
    %52 = vmatpush1.msra.mxu0 0.0
    %53 = vmatprep.subr.mxu0 0.0
    %54 = vmatpush1.msra.mxu0 0.0
    %55 = vmatprep.subr.mxu0 0.0
    %56 = vmatpush1.msra.mxu0 0.0
    %57 = vmatprep.subr.mxu0 0.0
    %58 = vmatpush1.msra.mxu0 0.0
    %59 = vmatprep.subr.mxu0 0.0
    %60 = vmatpush1.msra.mxu0 0.0
    %61 = vmatprep.subr.mxu0 0.0
    %62 = vmatpush1.msra.mxu0 0.0
    %63 = vmatprep.subr.mxu0 0.0
    %64 = vmatpush1.msra.mxu0 0.0
    %65 = vmatprep.subr.mxu0 0.0
    %66 = vmatpush1.msra.mxu0 0.0
    %67 = vmatprep.subr.mxu0 0.0
    %68 = vmatpush1.msra.mxu0 0.0
    %69 = vmatprep.subr.mxu0 0.0
    %70 = vmatpush1.msra.mxu0 0.0
    %71 = vmatprep.subr.mxu0 0.0
    %72 = vmatpush1.msra.mxu0 0.0
    %73 = vmatprep.subr.mxu0 0.0
    %74 = vmatpush1.msra.mxu0 0.0
    %75 = vmatprep.subr.mxu0 0.0
    %76 = vmatpush1.msra.mxu0 0.0
    %77 = vmatprep.subr.mxu0 0.0
    %78 = vmatpush1.msra.mxu0 0.0
    %79 = vmatprep.subr.mxu0 0.0
    %80 = vmatpush1.msra.mxu0 0.0
    %81 = vmatprep.subr.mxu0 0.0
    %82 = vmatpush1.msra.mxu0 0.0
    %83 = vmatprep.subr.mxu0 0.0
    %84 = vmatpush1.msra.mxu0 0.0
    %85 = vmatprep.subr.mxu0 0.0
    %86 = vmatpush1.msra.mxu0 0.0
    %87 = vmatprep.subr.mxu0 0.0
    %88 = vmatpush1.msra.mxu0 0.0
    %89 = vmatprep.subr.mxu0 0.0
    %90 = vmatpush1.msra.mxu0 0.0
    %91 = vmatprep.subr.mxu0 0.0
    %92 = vmatpush1.msra.mxu0 0.0
    %93 = vmatprep.subr.mxu0 0.0
    %94 = vmatpush1.msra.mxu0 0.0
    %95 = vmatprep.subr.mxu0 0.0
    %96 = vmatpush1.msra.mxu0 0.0
    %97 = vmatprep.subr.mxu0 0.0
    %98 = vmatpush1.msra.mxu0 0.0
    %99 = vmatprep.subr.mxu0 0.0
    %100 = vmatpush1.msra.mxu0 0.0
    %101 = vmatprep.subr.mxu0 0.0
    %102 = vmatpush1.msra.mxu0 0.0
    %103 = vmatprep.subr.mxu0 0.0
    %104 = vmatpush1.msra.mxu0 0.0
    %105 = vmatprep.subr.mxu0 0.0
    %106 = vmatpush1.msra.mxu0 0.0
    %107 = vmatprep.subr.mxu0 0.0
    %108 = vmatpush1.msra.mxu0 0.0
    %109 = vmatprep.mubr.f32.mxu0 0.0
    %110 = vmatmul.mubr.f32.gmra.mrb[0].mxu0 %v43
    %v111 = vpop.f32.mrb[0].mxu0
    %v112 = vadd.f32 0.0, %v111
    %v113 = vpop.f32.mrb[0].mxu0
    %114 = vdwg.mxu0
    %v115 = vmul.f32 %v112, 1.442695
    %v116 = vpow.pop %v115
    %117 = vst [vmem:[#allocation7] sm:$0xff] %v116
    // Predicated region
    $region18: #{tpu_custom_call.1} parent=1 // pred_check
      _
    $region19: #{tpu_custom_call.1} parent=1 // pred_check_branch
      %119 = sbr.rel (0) target = $region21
    $region20: #{tpu_custom_call.1} parent=1 // pred_region
      %s121 = ssub.s32 128, 128
      %122 = vsyncadd [#allocation4], %s121
      %s124 = sshll.u32 [#allocation7], 4
      %s125 = int_to_ptr.vmem [resolvable:$true] %s124
      %127 = dma.vmem_to_hbm [thread:$0]  %s125, 128, %s2, [#allocation4]
    $region21: #{tpu_custom_call.1} parent=1 // pred_fallthru
      _
    // Predicated region
    $region22: #{tpu_custom_call.1} parent=1 // pred_check
      _
    $region23: #{tpu_custom_call.1} parent=1 // pred_check_branch
      %129 = sbr.rel (0) target = $region25
    $region24: #{tpu_custom_call.1} parent=1 // pred_region
      %130 = dma.done [#allocation4], 128
    $region25: #{tpu_custom_call.1} parent=1 // pred_fallthru
      _
    %131 = vsyncpa [#allocation3], 1
    %132 = vsyncpa [#allocation6], 1
    %133 = vsyncpa [#allocation4], 1

</llo_original>
